<compile_context>
chip_gen: v6e
topology: v6e:2x2x1
jax: 0.10.0
libtpu: 0.0.40
codegen_flags: <defaults>
</compile_context>

<pallas_src>
import math

import jax
import jax.numpy as jnp
from jax import lax
from jax.experimental import pallas as pl
from jax.experimental.pallas import tpu as pltpu


def _affine_kernel(idx_ref, emb_ref, mats_t_ref, trans_ref, out_ref):
    # idx_ref   : VMEM (TM, 1) int32        -- operator index per row
    # emb_ref   : VMEM (TM, dim)            -- row block of embeddings
    # mats_t_ref: VMEM (num_ops, dim, dim)  -- pre-transposed operator matrices
    #                                          (mats_t[o, k, j] == M[o, j, k])
    # trans_ref : VMEM (num_ops, dim)       -- operator translations
    # out_ref   : VMEM (TM, dim)
    idx = idx_ref[...]                              # (TM, 1) int32
    x = emb_ref[...].astype(jnp.float32)            # (TM, dim)
    num_ops = mats_t_ref.shape[0]
    tm = idx.shape[0]

    # Translation term: one-hot gather on the MXU.
    onehot = (idx == lax.broadcasted_iota(jnp.int32, (tm, num_ops), 1)).astype(
        jnp.float32
    )                                               # (TM, num_ops)
    acc = jnp.dot(
        onehot,
        trans_ref[...].astype(jnp.float32),
        preferred_element_type=jnp.float32,
    )                                               # (TM, dim)

    # Linear term: X @ M_o^T per operator (static unrolled loop), then a
    # vectorized per-row select.  Tables are VMEM-resident; MXU is otherwise idle.
    for o in range(num_ops):
        y = jnp.dot(
            x,
            mats_t_ref[o].astype(jnp.float32),      # (dim, dim), already M_o^T
            preferred_element_type=jnp.float32,
        )                                           # (TM, dim)
        acc = acc + jnp.where(idx == o, y, 0.0)

    # Single full-width, lane-dense store.
    out_ref[...] = acc.astype(out_ref.dtype)


def _round_up(x, m):
    return ((x + m - 1) // m) * m


def affine_dynamic_operator(
    embeddings, operator_idxs, linear_transformations, translations, *, block_rows=512
):
    """Pallas equivalent of AffineDynamicOperator.forward.

    embeddings:             float (..., dim)
    operator_idxs:          int   (...)             (same leading shape)
    linear_transformations: float (num_operations, dim, dim)
    translations:           float (num_operations, dim)
    returns:                float (..., dim)
    """
    dim = embeddings.shape[-1]
    num_ops = linear_transformations.shape[0]
    if linear_transformations.shape != (num_ops, dim, dim):
        raise ValueError("linear_transformations must be (num_operations, dim, dim)")
    if translations.shape != (num_ops, dim):
        raise ValueError("translations must be (num_operations, dim)")
    if operator_idxs.shape != embeddings.shape[:-1]:
        raise ValueError("operator_idxs must match embeddings' leading shape")

    lead_shape = embeddings.shape[:-1]
    n = math.prod(lead_shape) if lead_shape else 1

    emb2d = embeddings.reshape(n, dim)
    idx2d = operator_idxs.reshape(n, 1).astype(jnp.int32)

    # Pre-transpose so the kernel computes x @ M_o^T with no in-kernel transpose.
    mats_t = jnp.swapaxes(linear_transformations, -1, -2)

    # Row block size: multiple of the sublane packing (8 for f32, 16 for bf16),
    # capped for VMEM headroom (sized for v7x's 64 MiB; plenty on v5e/v6e).
    itemsize = jnp.dtype(embeddings.dtype).itemsize
    sublane = 8 * max(1, 4 // itemsize)
    tm = min(block_rows, _round_up(n, sublane))
    tm = _round_up(tm, sublane)

    n_pad = _round_up(n, tm)
    if n_pad != n:
        emb2d = jnp.pad(emb2d, ((0, n_pad - n), (0, 0)))
        idx2d = jnp.pad(idx2d, ((0, n_pad - n), (0, 0)))

    grid = (n_pad // tm,)

    grid_spec = pltpu.PrefetchScalarGridSpec(
        num_scalar_prefetch=0,
        grid=grid,
        in_specs=[
            # per-block operator indices
            pl.BlockSpec((tm, 1), lambda i: (i, 0)),
            # per-block embedding rows
            pl.BlockSpec((tm, dim), lambda i: (i, 0)),
            # full parameter tables, VMEM-resident across the whole grid
            pl.BlockSpec((num_ops, dim, dim), lambda i: (0, 0, 0)),
            pl.BlockSpec((num_ops, dim), lambda i: (0, 0)),
        ],
        out_specs=pl.BlockSpec((tm, dim), lambda i: (i, 0)),
    )

    cost = pl.CostEstimate(
        flops=2 * n_pad * dim * dim * num_ops + 2 * n_pad * num_ops * dim,
        transcendentals=0,
        bytes_accessed=(
            2 * n_pad * dim * itemsize               # embeddings in + out
            + n_pad * 4                              # indices
            + num_ops * (dim * dim + dim) * 4        # tables (once)
        ),
    )

    out2d = pl.pallas_call(
        _affine_kernel,
        out_shape=jax.ShapeDtypeStruct((n_pad, dim), embeddings.dtype),
        grid_spec=grid_spec,
        compiler_params=pltpu.CompilerParams(
            dimension_semantics=("parallel",)
        ),
        cost_estimate=cost,
    )(idx2d, emb2d, mats_t, translations)

    out2d = out2d[:n]
    return out2d.reshape(*lead_shape, dim)


def _reference(embeddings, operator_idxs, linear_transformations, translations):
    gathered = linear_transformations[operator_idxs]        # (..., dim, dim)
    out = jnp.einsum("...jk,...k->...j", gathered, embeddings)
    return out + translations[operator_idxs]


if __name__ == "__main__":
    key = jax.random.PRNGKey(0)
    k_emb, k_idx, k_mat, k_tr = jax.random.split(key, 4)

    dim = 32
    num_operations = 4
    batch, seq = 2, 8  # embeddings may have any number (>=1) of leading dims

    embeddings = jax.random.normal(k_emb, (batch, seq, dim), dtype=jnp.float32)
    operator_idxs = jax.random.randint(
        k_idx, (batch, seq), 0, num_operations, dtype=jnp.int32
    )

    # Module __init__ uses identity matrices / zero translations; perturb them
    # deterministically so the affine math is actually exercised.
    eye = jnp.broadcast_to(
        jnp.eye(dim, dtype=jnp.float32), (num_operations, dim, dim)
    )
    linear_transformations = eye + 0.1 * jax.random.normal(
        k_mat, (num_operations, dim, dim), dtype=jnp.float32
    )
    translations = 0.1 * jax.random.normal(
        k_tr, (num_operations, dim), dtype=jnp.float32
    )

    out = affine_dynamic_operator(
        embeddings, operator_idxs, linear_transformations, translations
    )
    out = jax.block_until_ready(out)

    ref = _reference(embeddings, operator_idxs, linear_transformations, translations)
    assert out.shape == embeddings.shape
    assert out.dtype == embeddings.dtype
    assert jnp.allclose(out, ref, atol=1e-5, rtol=1e-5), "mismatch vs reference"

    print("KERNEL_OK")
</pallas_src>

<mosaic_0001>
module attributes {stable_mosaic.version = 11 : i64} {
  func.func @_affine_kernel(%arg0: i32, %arg1: memref<16x1xi32, #tpu.memory_space<vmem>>, %arg2: memref<16x32xf32, #tpu.memory_space<vmem>>, %arg3: memref<4x32x32xf32, #tpu.memory_space<vmem>>, %arg4: memref<4x32xf32, #tpu.memory_space<vmem>>, %arg5: memref<16x32xf32, #tpu.memory_space<vmem>>) attributes {dimension_semantics = [#tpu.dimension_semantics<parallel>], iteration_bounds = array<i64: 1>, scalar_prefetch = 0 : i64, scratch_operands = 0 : i64, tpu.core_type = #tpu.core_type<tc>, window_params = [{transform_indices = @transform_0, window_bounds = array<i64: 16, 1>}, {transform_indices = @transform_1, window_bounds = array<i64: 16, 32>}, {pipeline_mode = #tpu.pipeline_mode<synchronous>, transform_indices = @transform_2, window_bounds = array<i64: 4, 32, 32>}, {pipeline_mode = #tpu.pipeline_mode<synchronous>, transform_indices = @transform_3, window_bounds = array<i64: 4, 32>}, {transform_indices = @transform_4, window_bounds = array<i64: 16, 32>}]} {
    %c0 = arith.constant 0 : index
    %c0_0 = arith.constant 0 : index
    %0 = vector.load %arg1[%c0, %c0_0] : memref<16x1xi32, #tpu.memory_space<vmem>>, vector<16x1xi32>
    %c0_1 = arith.constant 0 : index
    %c0_2 = arith.constant 0 : index
    %1 = vector.load %arg2[%c0_1, %c0_2] : memref<16x32xf32, #tpu.memory_space<vmem>>, vector<16x32xf32>
    %2 = tpu.iota {dimensions = array<i32: 1>} : vector<16x4xi32>
    %3 = vector.broadcast %0 : vector<16x1xi32> to vector<16x4xi32>
    %4 = arith.cmpi eq, %3, %2 : vector<16x4xi32>
    %5 = arith.extui %4 : vector<16x4xi1> to vector<16x4xi32>
    %6 = arith.sitofp %5 : vector<16x4xi32> to vector<16x4xf32>
    %c0_3 = arith.constant 0 : index
    %c0_4 = arith.constant 0 : index
    %7 = vector.load %arg4[%c0_3, %c0_4] : memref<4x32xf32, #tpu.memory_space<vmem>>, vector<4x32xf32>
    %cst = arith.constant dense<0.000000e+00> : vector<16x32xf32>
    %8 = tpu.matmul %6, %7, %cst {dimension_numbers = #tpu.dot_dimension_numbers<[1], [0], [0], [1], [0, 0, 1, 1], [], []>} : vector<16x4xf32>, vector<4x32xf32>, vector<16x32xf32> -> vector<16x32xf32>
    %c0_5 = arith.constant 0 : index
    %c0_6 = arith.constant 0 : index
    %c0_7 = arith.constant 0 : index
    %9 = vector.load %arg3[%c0_5, %c0_6, %c0_7] : memref<4x32x32xf32, #tpu.memory_space<vmem>>, vector<1x32x32xf32>
    %10 = vector.shape_cast %9 : vector<1x32x32xf32> to vector<32x32xf32>
    %cst_8 = arith.constant dense<0.000000e+00> : vector<16x32xf32>
    %11 = tpu.matmul %1, %10, %cst_8 {dimension_numbers = #tpu.dot_dimension_numbers<[1], [0], [0], [1], [0, 0, 1, 1], [], []>} : vector<16x32xf32>, vector<32x32xf32>, vector<16x32xf32> -> vector<16x32xf32>
    %c0_i32 = arith.constant 0 : i32
    %12 = vector.broadcast %c0_i32 : i32 to vector<16x1xi32>
    %13 = arith.cmpi eq, %0, %12 : vector<16x1xi32>
    %cst_9 = arith.constant 0.000000e+00 : f32
    %14 = vector.shape_cast %13 : vector<16x1xi1> to vector<16x1xi1>
    %15 = vector.broadcast %14 : vector<16x1xi1> to vector<16x32xi1>
    %16 = vector.broadcast %cst_9 : f32 to vector<16x32xf32>
    %17 = arith.select %15, %11, %16 : vector<16x32xi1>, vector<16x32xf32>
    %18 = arith.addf %8, %17 : vector<16x32xf32>
    %c1 = arith.constant 1 : index
    %c0_10 = arith.constant 0 : index
    %c0_11 = arith.constant 0 : index
    %19 = vector.load %arg3[%c1, %c0_10, %c0_11] : memref<4x32x32xf32, #tpu.memory_space<vmem>>, vector<1x32x32xf32>
    %20 = vector.shape_cast %19 : vector<1x32x32xf32> to vector<32x32xf32>
    %cst_12 = arith.constant dense<0.000000e+00> : vector<16x32xf32>
    %21 = tpu.matmul %1, %20, %cst_12 {dimension_numbers = #tpu.dot_dimension_numbers<[1], [0], [0], [1], [0, 0, 1, 1], [], []>} : vector<16x32xf32>, vector<32x32xf32>, vector<16x32xf32> -> vector<16x32xf32>
    %c1_i32 = arith.constant 1 : i32
    %22 = vector.broadcast %c1_i32 : i32 to vector<16x1xi32>
    %23 = arith.cmpi eq, %0, %22 : vector<16x1xi32>
    %cst_13 = arith.constant 0.000000e+00 : f32
    %24 = vector.shape_cast %23 : vector<16x1xi1> to vector<16x1xi1>
    %25 = vector.broadcast %24 : vector<16x1xi1> to vector<16x32xi1>
    %26 = vector.broadcast %cst_13 : f32 to vector<16x32xf32>
    %27 = arith.select %25, %21, %26 : vector<16x32xi1>, vector<16x32xf32>
    %28 = arith.addf %18, %27 : vector<16x32xf32>
    %c2 = arith.constant 2 : index
    %c0_14 = arith.constant 0 : index
    %c0_15 = arith.constant 0 : index
    %29 = vector.load %arg3[%c2, %c0_14, %c0_15] : memref<4x32x32xf32, #tpu.memory_space<vmem>>, vector<1x32x32xf32>
    %30 = vector.shape_cast %29 : vector<1x32x32xf32> to vector<32x32xf32>
    %cst_16 = arith.constant dense<0.000000e+00> : vector<16x32xf32>
    %31 = tpu.matmul %1, %30, %cst_16 {dimension_numbers = #tpu.dot_dimension_numbers<[1], [0], [0], [1], [0, 0, 1, 1], [], []>} : vector<16x32xf32>, vector<32x32xf32>, vector<16x32xf32> -> vector<16x32xf32>
    %c2_i32 = arith.constant 2 : i32
    %32 = vector.broadcast %c2_i32 : i32 to vector<16x1xi32>
    %33 = arith.cmpi eq, %0, %32 : vector<16x1xi32>
    %cst_17 = arith.constant 0.000000e+00 : f32
    %34 = vector.shape_cast %33 : vector<16x1xi1> to vector<16x1xi1>
    %35 = vector.broadcast %34 : vector<16x1xi1> to vector<16x32xi1>
    %36 = vector.broadcast %cst_17 : f32 to vector<16x32xf32>
    %37 = arith.select %35, %31, %36 : vector<16x32xi1>, vector<16x32xf32>
    %38 = arith.addf %28, %37 : vector<16x32xf32>
    %c3 = arith.constant 3 : index
    %c0_18 = arith.constant 0 : index
    %c0_19 = arith.constant 0 : index
    %39 = vector.load %arg3[%c3, %c0_18, %c0_19] : memref<4x32x32xf32, #tpu.memory_space<vmem>>, vector<1x32x32xf32>
    %40 = vector.shape_cast %39 : vector<1x32x32xf32> to vector<32x32xf32>
    %cst_20 = arith.constant dense<0.000000e+00> : vector<16x32xf32>
    %41 = tpu.matmul %1, %40, %cst_20 {dimension_numbers = #tpu.dot_dimension_numbers<[1], [0], [0], [1], [0, 0, 1, 1], [], []>} : vector<16x32xf32>, vector<32x32xf32>, vector<16x32xf32> -> vector<16x32xf32>
    %c3_i32 = arith.constant 3 : i32
    %42 = vector.broadcast %c3_i32 : i32 to vector<16x1xi32>
    %43 = arith.cmpi eq, %0, %42 : vector<16x1xi32>
    %cst_21 = arith.constant 0.000000e+00 : f32
    %44 = vector.shape_cast %43 : vector<16x1xi1> to vector<16x1xi1>
    %45 = vector.broadcast %44 : vector<16x1xi1> to vector<16x32xi1>
    %46 = vector.broadcast %cst_21 : f32 to vector<16x32xf32>
    %47 = arith.select %45, %41, %46 : vector<16x32xi1>, vector<16x32xf32>
    %48 = arith.addf %38, %47 : vector<16x32xf32>
    %c0_22 = arith.constant 0 : index
    %c0_23 = arith.constant 0 : index
    %49 = vector.load %arg5[%c0_22, %c0_23] : memref<16x32xf32, #tpu.memory_space<vmem>>, vector<16x32xf32>
    tpu.vector_store %arg5[%c0_22, %c0_23], %48 {strides = array<i32>} : memref<16x32xf32, #tpu.memory_space<vmem>>, vector<16x32xf32>,
    return
  }
  func.func @transform_0(%arg0: i32) -> (i32, i32) {
    %c0_i32 = arith.constant 0 : i32
    %c0_i32_0 = arith.constant 0 : i32
    return %arg0, %c0_i32 : i32, i32
  }
  func.func @transform_1(%arg0: i32) -> (i32, i32) {
    %c0_i32 = arith.constant 0 : i32
    %c0_i32_0 = arith.constant 0 : i32
    return %arg0, %c0_i32 : i32, i32
  }
  func.func @transform_2(%arg0: i32) -> (i32, i32, i32) {
    %c0_i32 = arith.constant 0 : i32
    %c0_i32_0 = arith.constant 0 : i32
    %c0_i32_1 = arith.constant 0 : i32
    %c0_i32_2 = arith.constant 0 : i32
    return %c0_i32, %c0_i32_0, %c0_i32_1 : i32, i32, i32
  }
  func.func @transform_3(%arg0: i32) -> (i32, i32) {
    %c0_i32 = arith.constant 0 : i32
    %c0_i32_0 = arith.constant 0 : i32
    %c0_i32_1 = arith.constant 0 : i32
    return %c0_i32, %c0_i32_0 : i32, i32
  }
  func.func @transform_4(%arg0: i32) -> (i32, i32) {
    %c0_i32 = arith.constant 0 : i32
    %c0_i32_0 = arith.constant 0 : i32
    return %arg0, %c0_i32 : i32, i32
  }
}

</mosaic_0001>

<llo_original>
// kernel: tpu_custom_call.1
$region0: #{tpu_custom_call.1}
  #allocation0 [shape = 'u32[]', space=smem, size = 0x4, offset = 0x4, fixed_abs, tag = 'smem constant byte address 0x4 - core index']
  #allocation1 [shape = 'u32[144,128]{1,0:T(1,128)}', space=vmem, size = 0x12000, scoped, tag = 'internal scratch']
  %s0 = inlined_call_operand.vmem [shape: s32[16,1], index: 0, kind: input, shape index: {}]
  %s1 = inlined_call_operand.vmem [shape: f32[16,32], index: 1, kind: input, shape index: {}]
  %s2 = inlined_call_operand.hbm [shape: f32[4,32,32], index: 2, kind: input, shape index: {}]
  %s3 = inlined_call_operand.vmem [shape: f32[4,32], index: 3, kind: input, shape index: {}]
  %s4 = inlined_call_operand.hbm [shape: f32[16,32], index: 4, kind: output, shape index: {}]
  %s5 = sld [smem:[#allocation0]]
  $region30: #{tpu_custom_call.1} parent=0
    _
  %s7 = ssub.s32 1, %s5
  %s8 = scalar_select 0, %s7, %s5
  $region1: #{tpu_custom_call.1} parent=0
    #allocation2 [shape = 'u8[65536]{0}', space=vmem, size = 0x10000, scoped, tag = 'input window, operand 2, single buffered']
    #allocation3 [shape = 's32[1]{0}', space=sflag, size = 0x4, scoped, tag = 'scoped memory for tpu_custom_call.1']
    #allocation4 [shape = 's32[1]{0}', space=sflag, size = 0x4, scoped, tag = 'scoped memory for tpu_custom_call.1']
    #allocation5 [shape = 'u8[8192]{0}', space=vmem, size = 0x2000, scoped, tag = 'output window, operand 0, single buffered']
    %9 = vsyncpa [#allocation3], 0
    %10 = vsyncpa [#allocation4], 0
    // Predicated region
    $region2: #{tpu_custom_call.1} parent=1 // pred_check
      _
    $region3: #{tpu_custom_call.1} parent=1 // pred_check_branch
      %12 = sbr.rel (0) target = $region5
    $region4: #{tpu_custom_call.1} parent=1 // pred_region
      _
    $region5: #{tpu_custom_call.1} parent=1 // pred_fallthru
      _
    // Predicated region
    $region6: #{tpu_custom_call.1} parent=1 // pred_check
      _
    $region7: #{tpu_custom_call.1} parent=1 // pred_check_branch
      %14 = sbr.rel (0) target = $region9
    $region8: #{tpu_custom_call.1} parent=1 // pred_region
      _
    $region9: #{tpu_custom_call.1} parent=1 // pred_fallthru
      _
    // Predicated region
    $region10: #{tpu_custom_call.1} parent=1 // pred_check
      _
    $region11: #{tpu_custom_call.1} parent=1 // pred_check_branch
      %16 = sbr.rel (0) target = $region13
    $region12: #{tpu_custom_call.1} parent=1 // pred_region
      %s18 = ssub.s32 2048, 2048
      %19 = vsyncadd [#allocation3], %s18
      %s20 = sshll.u32 [#allocation2], 4
      %s21 = int_to_ptr.vmem [resolvable:$true] %s20
      %26 = dma.hbm_to_vmem [thread:$0]  %s2, 2048, %s21, [#allocation3], 128, 128, 8
    $region13: #{tpu_custom_call.1} parent=1 // pred_fallthru
      _
    // Predicated region
    $region14: #{tpu_custom_call.1} parent=1 // pred_check
      _
    $region15: #{tpu_custom_call.1} parent=1 // pred_check_branch
      %28 = sbr.rel (0) target = $region17
    $region16: #{tpu_custom_call.1} parent=1 // pred_region
      _
    $region17: #{tpu_custom_call.1} parent=1 // pred_fallthru
      _
    // Predicated region
    $region18: #{tpu_custom_call.1} parent=1 // pred_check
      _
    $region19: #{tpu_custom_call.1} parent=1 // pred_check_branch
      %30 = sbr.rel (0) target = $region21
    $region20: #{tpu_custom_call.1} parent=1 // pred_region
      %31 = dma.done [#allocation3], 2048
    $region21: #{tpu_custom_call.1} parent=1 // pred_fallthru
      _
    %v32 = vld [vmem:[%s0] sm:$0xff]
    %v33 = vld [vmem:[%s0 + $0x8] sm:$0xff]
    %v34 = vld [vmem:[%s1] sm:$0xff]
    %v35 = vld [vmem:[%s1 + $0x8] sm:$0xff]
    %v36 = vlaneseq
    %v37 = vand.u32 %v36, 127
    %38 = vset.pattern.permute.xlu0 0
    %39 = vperm.xlu0 %38, %v32
    %v40 = vpop.permute.xlu0 %39
    %41 = vset.pattern.permute.xlu0 0
    %42 = vperm.xlu0 %41, %v33
    %v43 = vpop.permute.xlu0 %42
    %vm44 = vcmp.eq.s32.totalorder %v40, %v37
    %vm45 = vcmp.eq.s32.totalorder %v43, %v37
    %v46 = vsel %vm44, 1, 0
    %v47 = vsel %vm45, 1, 0
    %v48 = vcvt.s32.f32 %v46
    %v49 = vcvt.s32.f32 %v47
    %v50 = vld [vmem:[%s3] sm:$0xf]
    %v51 = vld [vmem:[#allocation2] sm:$0xff]
    %v52 = vld [vmem:[#allocation2 + $0x8] sm:$0xff]
    %v53 = vld [vmem:[#allocation2 + $0x10] sm:$0xff]
    %v54 = vld [vmem:[#allocation2 + $0x18] sm:$0xff]
    %vm55 = vcmask 261120
    %v57 = vsel %vm55, %v34, 0
    %v60 = vsel %vm55, %v35, 0
    %62 = vmatprep.subr.mxu0 0.0
    %63 = vmatpush1.msra.mxu0 0.0
    %64 = vmatprep.subr.mxu0 0.0
    %65 = vmatpush1.msra.mxu0 0.0
    %66 = vmatprep.subr.mxu0 0.0
    %67 = vmatpush1.msra.mxu0 0.0
    %68 = vmatprep.subr.mxu0 0.0
    %69 = vmatpush1.msra.mxu0 0.0
    %70 = vmatprep.subr.mxu0 0.0
    %71 = vmatpush1.msra.mxu0 0.0
    %72 = vmatprep.subr.mxu0 0.0
    %73 = vmatpush1.msra.mxu0 0.0
    %74 = vmatprep.subr.mxu0 0.0
    %75 = vmatpush1.msra.mxu0 0.0
    %76 = vmatprep.subr.mxu0 0.0
    %77 = vmatpush1.msra.mxu0 0.0
    %78 = vmatprep.subr.mxu0 0.0
    %79 = vmatpush1.msra.mxu0 0.0
    %80 = vmatprep.subr.mxu0 0.0
    %81 = vmatpush1.msra.mxu0 0.0
    %82 = vmatprep.subr.mxu0 0.0
    %83 = vmatpush1.msra.mxu0 0.0
    %84 = vmatprep.subr.mxu0 0.0
    %85 = vmatpush1.msra.mxu0 0.0
    %86 = vmatprep.subr.mxu0 0.0
    %87 = vmatpush1.msra.mxu0 %v54
    %88 = vmatprep.subr.mxu0 0.0
    %89 = vmatpush1.msra.mxu0 %v53
    %90 = vmatprep.subr.mxu0 0.0
    %91 = vmatpush1.msra.mxu0 %v52
    %92 = vmatprep.subr.mxu0 0.0
    %93 = vmatpush1.msra.mxu0 %v51
    %94 = vmatprep.subr.mxu0 0.0
    %95 = vmatpush2.msra.mxu0 0.0
    %96 = vmatprep.subr.mxu0 0.0
    %97 = vmatpush2.msra.mxu0 0.0
    %98 = vmatprep.subr.mxu0 0.0
    %99 = vmatpush2.msra.mxu0 0.0
    %100 = vmatprep.subr.mxu0 0.0
    %101 = vmatpush2.msra.mxu0 0.0
    %102 = vmatprep.subr.mxu0 0.0
    %103 = vmatpush2.msra.mxu0 0.0
    %104 = vmatprep.subr.mxu0 0.0
    %105 = vmatpush2.msra.mxu0 0.0
    %106 = vmatprep.subr.mxu0 0.0
    %107 = vmatpush2.msra.mxu0 0.0
    %108 = vmatprep.subr.mxu0 0.0
    %109 = vmatpush2.msra.mxu0 0.0
    %110 = vmatprep.subr.mxu0 0.0
    %111 = vmatpush2.msra.mxu0 0.0
    %112 = vmatprep.subr.mxu0 0.0
    %113 = vmatpush2.msra.mxu0 0.0
    %114 = vmatprep.subr.mxu0 0.0
    %115 = vmatpush2.msra.mxu0 0.0
    %116 = vmatprep.subr.mxu0 0.0
    %117 = vmatpush2.msra.mxu0 0.0
    %118 = vmatprep.subr.mxu0 0.0
    %119 = vmatpush2.msra.mxu0 0.0
    %120 = vmatprep.subr.mxu0 0.0
    %121 = vmatpush2.msra.mxu0 0.0
    %122 = vmatprep.subr.mxu0 0.0
    %123 = vmatpush2.msra.mxu0 0.0
    %124 = vmatprep.subr.mxu0 0.0
    %125 = vmatpush2.msra.mxu0 0.0
    %126 = vmatprep.mubr.f32.mxu0 0.0
    %127 = vmatmul.mubr.f32.gmra.mxu0 %v57
    %v128 = vpop.f32.mrf.mxu0
    %v129 = vadd.f32 0.0, %v128
    %v130 = vpop.f32.mrf.mxu0
    %131 = vmatprep.mubr.f32.mxu0 0.0
    %132 = vmatmul.mubr.f32.gmra.mxu0 %v60
    %v133 = vpop.f32.mrf.mxu0
    %v134 = vadd.f32 0.0, %v133
    %v135 = vpop.f32.mrf.mxu0
    %136 = vdwg.mxu0
    %vm137 = vcmp.eq.s32.totalorder %v32, 0
    %vm138 = vcmp.eq.s32.totalorder %v33, 0
    %v139 = vsel %vm137, 1, 0
    %v140 = vsel %vm138, 1, 0
    %141 = vset.pattern.permute.xlu0 0
    %142 = vperm.xlu0 %141, %v139
    %v143 = vpop.permute.xlu0 %142
    %144 = vset.pattern.permute.xlu0 0
    %145 = vperm.xlu0 %144, %v140
    %v146 = vpop.permute.xlu0 %145
    %vm147 = vcmp.eq.s32.totalorder %v143, 1
    %vm148 = vcmp.eq.s32.totalorder %v146, 1
    %v149 = vsel %vm147, %v129, 0.0
    %v150 = vsel %vm148, %v134, 0.0
    %vm151 = vcmask 31744
    %v153 = vsel %vm151, %v48, 0
    %v156 = vsel %vm151, %v49, 0
    %vm158 = vcmask 1043456
    %v160 = vsel %vm158, %v50, 0
    %162 = vmatprep.subr.mxu0 0.0
    %163 = vmatpush1.msra.mxu0 0.0
    %164 = vmatprep.subr.mxu0 0.0
    %165 = vmatpush1.msra.mxu0 0.0
    %166 = vmatprep.subr.mxu0 0.0
    %167 = vmatpush1.msra.mxu0 0.0
    %168 = vmatprep.subr.mxu0 0.0
    %169 = vmatpush1.msra.mxu0 0.0
    %170 = vmatprep.subr.mxu0 0.0
    %171 = vmatpush1.msra.mxu0 0.0
    %172 = vmatprep.subr.mxu0 0.0
    %173 = vmatpush1.msra.mxu0 0.0
    %174 = vmatprep.subr.mxu0 0.0
    %175 = vmatpush1.msra.mxu0 0.0
    %176 = vmatprep.subr.mxu0 0.0
    %177 = vmatpush1.msra.mxu0 0.0
    %178 = vmatprep.subr.mxu0 0.0
    %179 = vmatpush1.msra.mxu0 0.0
    %180 = vmatprep.subr.mxu0 0.0
    %181 = vmatpush1.msra.mxu0 0.0
    %182 = vmatprep.subr.mxu0 0.0
    %183 = vmatpush1.msra.mxu0 0.0
    %184 = vmatprep.subr.mxu0 0.0
    %185 = vmatpush1.msra.mxu0 0.0
    %186 = vmatprep.subr.mxu0 0.0
    %187 = vmatpush1.msra.mxu0 0.0
    %188 = vmatprep.subr.mxu0 0.0
    %189 = vmatpush1.msra.mxu0 0.0
    %190 = vmatprep.subr.mxu0 0.0
    %191 = vmatpush1.msra.mxu0 0.0
    %192 = vmatprep.subr.mxu0 0.0
    %193 = vmatpush1.msra.mxu0 %v160
    %194 = vmatprep.subr.mxu0 0.0
    %195 = vmatpush2.msra.mxu0 0.0
    %196 = vmatprep.subr.mxu0 0.0
    %197 = vmatpush2.msra.mxu0 0.0
    %198 = vmatprep.subr.mxu0 0.0
    %199 = vmatpush2.msra.mxu0 0.0
    %200 = vmatprep.subr.mxu0 0.0
    %201 = vmatpush2.msra.mxu0 0.0
    %202 = vmatprep.subr.mxu0 0.0
    %203 = vmatpush2.msra.mxu0 0.0
    %204 = vmatprep.subr.mxu0 0.0
    %205 = vmatpush2.msra.mxu0 0.0
    %206 = vmatprep.subr.mxu0 0.0
    %207 = vmatpush2.msra.mxu0 0.0
    %208 = vmatprep.subr.mxu0 0.0
    %209 = vmatpush2.msra.mxu0 0.0
    %210 = vmatprep.subr.mxu0 0.0
    %211 = vmatpush2.msra.mxu0 0.0
    %212 = vmatprep.subr.mxu0 0.0
    %213 = vmatpush2.msra.mxu0 0.0
    %214 = vmatprep.subr.mxu0 0.0
    %215 = vmatpush2.msra.mxu0 0.0
    %216 = vmatprep.subr.mxu0 0.0
    %217 = vmatpush2.msra.mxu0 0.0
    %218 = vmatprep.subr.mxu0 0.0
    %219 = vmatpush2.msra.mxu0 0.0
    %220 = vmatprep.subr.mxu0 0.0
    %221 = vmatpush2.msra.mxu0 0.0
    %222 = vmatprep.subr.mxu0 0.0
    %223 = vmatpush2.msra.mxu0 0.0
    %224 = vmatprep.subr.mxu0 0.0
    %225 = vmatpush2.msra.mxu0 0.0
    %226 = vmatprep.mubr.f32.mxu0 0.0
    %227 = vmatmul.mubr.f32.gmra.mxu0 %v153
    %v228 = vpop.f32.mrf.mxu0
    %v229 = vadd.f32 %v149, %v228
    %v230 = vpop.f32.mrf.mxu0
    %231 = vmatprep.mubr.f32.mxu0 0.0
    %232 = vmatmul.mubr.f32.gmra.mxu0 %v156
    %v233 = vpop.f32.mrf.mxu0
    %v234 = vadd.f32 %v150, %v233
    %v235 = vpop.f32.mrf.mxu0
    %236 = vdwg.mxu0
    %s237 = scalar_lea.vmem [#allocation2], 32
    %v238 = vld [vmem:[%s237] sm:$0xff]
    %v239 = vld [vmem:[%s237 + $0x8] sm:$0xff]
    %v240 = vld [vmem:[%s237 + $0x10] sm:$0xff]
    %v241 = vld [vmem:[%s237 + $0x18] sm:$0xff]
    %242 = vmatprep.subr.mxu0 0.0
    %243 = vmatpush1.msra.mxu0 0.0
    %244 = vmatprep.subr.mxu0 0.0
    %245 = vmatpush1.msra.mxu0 0.0
    %246 = vmatprep.subr.mxu0 0.0
    %247 = vmatpush1.msra.mxu0 0.0
    %248 = vmatprep.subr.mxu0 0.0
    %249 = vmatpush1.msra.mxu0 0.0
    %250 = vmatprep.subr.mxu0 0.0
    %251 = vmatpush1.msra.mxu0 0.0
    %252 = vmatprep.subr.mxu0 0.0
    %253 = vmatpush1.msra.mxu0 0.0
    %254 = vmatprep.subr.mxu0 0.0
    %255 = vmatpush1.msra.mxu0 0.0
    %256 = vmatprep.subr.mxu0 0.0
    %257 = vmatpush1.msra.mxu0 0.0
    %258 = vmatprep.subr.mxu0 0.0
    %259 = vmatpush1.msra.mxu0 0.0
    %260 = vmatprep.subr.mxu0 0.0
    %261 = vmatpush1.msra.mxu0 0.0
    %262 = vmatprep.subr.mxu0 0.0
    %263 = vmatpush1.msra.mxu0 0.0
    %264 = vmatprep.subr.mxu0 0.0
    %265 = vmatpush1.msra.mxu0 0.0
    %266 = vmatprep.subr.mxu0 0.0
    %267 = vmatpush1.msra.mxu0 %v241
    %268 = vmatprep.subr.mxu0 0.0
    %269 = vmatpush1.msra.mxu0 %v240
    %270 = vmatprep.subr.mxu0 0.0
    %271 = vmatpush1.msra.mxu0 %v239
    %272 = vmatprep.subr.mxu0 0.0
    %273 = vmatpush1.msra.mxu0 %v238
    %274 = vmatprep.subr.mxu0 0.0
    %275 = vmatpush2.msra.mxu0 0.0
    %276 = vmatprep.subr.mxu0 0.0
    %277 = vmatpush2.msra.mxu0 0.0
    %278 = vmatprep.subr.mxu0 0.0
    %279 = vmatpush2.msra.mxu0 0.0
    %280 = vmatprep.subr.mxu0 0.0
    %281 = vmatpush2.msra.mxu0 0.0
    %282 = vmatprep.subr.mxu0 0.0
    %283 = vmatpush2.msra.mxu0 0.0
    %284 = vmatprep.subr.mxu0 0.0
    %285 = vmatpush2.msra.mxu0 0.0
    %286 = vmatprep.subr.mxu0 0.0
    %287 = vmatpush2.msra.mxu0 0.0
    %288 = vmatprep.subr.mxu0 0.0
    %289 = vmatpush2.msra.mxu0 0.0
    %290 = vmatprep.subr.mxu0 0.0
    %291 = vmatpush2.msra.mxu0 0.0
    %292 = vmatprep.subr.mxu0 0.0
    %293 = vmatpush2.msra.mxu0 0.0
    %294 = vmatprep.subr.mxu0 0.0
    %295 = vmatpush2.msra.mxu0 0.0
    %296 = vmatprep.subr.mxu0 0.0
    %297 = vmatpush2.msra.mxu0 0.0
    %298 = vmatprep.subr.mxu0 0.0
    %299 = vmatpush2.msra.mxu0 0.0
    %300 = vmatprep.subr.mxu0 0.0
    %301 = vmatpush2.msra.mxu0 0.0
    %302 = vmatprep.subr.mxu0 0.0
    %303 = vmatpush2.msra.mxu0 0.0
    %304 = vmatprep.subr.mxu0 0.0
    %305 = vmatpush2.msra.mxu0 0.0
    %306 = vmatprep.mubr.f32.mxu0 0.0
    %307 = vmatmul.mubr.f32.gmra.mxu0 %v57
    %v308 = vpop.f32.mrf.mxu0
    %v309 = vadd.f32 0.0, %v308
    %v310 = vpop.f32.mrf.mxu0
    %311 = vmatprep.mubr.f32.mxu0 0.0
    %312 = vmatmul.mubr.f32.gmra.mxu0 %v60
    %v313 = vpop.f32.mrf.mxu0
    %v314 = vadd.f32 0.0, %v313
    %v315 = vpop.f32.mrf.mxu0
    %316 = vdwg.mxu0
    %vm317 = vcmp.eq.s32.totalorder %v32, 1
    %vm318 = vcmp.eq.s32.totalorder %v33, 1
    %v319 = vsel %vm317, 1, 0
    %v320 = vsel %vm318, 1, 0
    %321 = vset.pattern.permute.xlu0 0
    %322 = vperm.xlu0 %321, %v319
    %v323 = vpop.permute.xlu0 %322
    %324 = vset.pattern.permute.xlu0 0
    %325 = vperm.xlu0 %324, %v320
    %v326 = vpop.permute.xlu0 %325
    %vm327 = vcmp.eq.s32.totalorder %v323, 1
    %vm328 = vcmp.eq.s32.totalorder %v326, 1
    %v329 = vsel %vm327, %v309, 0.0
    %v330 = vsel %vm328, %v314, 0.0
    %v331 = vadd.f32 %v229, %v329
    %v332 = vadd.f32 %v234, %v330
    %s333 = scalar_lea.vmem [#allocation2], 64
    %v334 = vld [vmem:[%s333] sm:$0xff]
    %v335 = vld [vmem:[%s333 + $0x8] sm:$0xff]
    %v336 = vld [vmem:[%s333 + $0x10] sm:$0xff]
    %v337 = vld [vmem:[%s333 + $0x18] sm:$0xff]
    %338 = vmatprep.subr.mxu0 0.0
    %339 = vmatpush1.msra.mxu0 0.0
    %340 = vmatprep.subr.mxu0 0.0
    %341 = vmatpush1.msra.mxu0 0.0
    %342 = vmatprep.subr.mxu0 0.0
    %343 = vmatpush1.msra.mxu0 0.0
    %344 = vmatprep.subr.mxu0 0.0
    %345 = vmatpush1.msra.mxu0 0.0
    %346 = vmatprep.subr.mxu0 0.0
    %347 = vmatpush1.msra.mxu0 0.0
    %348 = vmatprep.subr.mxu0 0.0
    %349 = vmatpush1.msra.mxu0 0.0
    %350 = vmatprep.subr.mxu0 0.0
    %351 = vmatpush1.msra.mxu0 0.0
    %352 = vmatprep.subr.mxu0 0.0
    %353 = vmatpush1.msra.mxu0 0.0
    %354 = vmatprep.subr.mxu0 0.0
    %355 = vmatpush1.msra.mxu0 0.0
    %356 = vmatprep.subr.mxu0 0.0
    %357 = vmatpush1.msra.mxu0 0.0
    %358 = vmatprep.subr.mxu0 0.0
    %359 = vmatpush1.msra.mxu0 0.0
    %360 = vmatprep.subr.mxu0 0.0
    %361 = vmatpush1.msra.mxu0 0.0
    %362 = vmatprep.subr.mxu0 0.0
    %363 = vmatpush1.msra.mxu0 %v337
    %364 = vmatprep.subr.mxu0 0.0
    %365 = vmatpush1.msra.mxu0 %v336
    %366 = vmatprep.subr.mxu0 0.0
    %367 = vmatpush1.msra.mxu0 %v335
    %368 = vmatprep.subr.mxu0 0.0
    %369 = vmatpush1.msra.mxu0 %v334
    %370 = vmatprep.subr.mxu0 0.0
    %371 = vmatpush2.msra.mxu0 0.0
    %372 = vmatprep.subr.mxu0 0.0
    %373 = vmatpush2.msra.mxu0 0.0
    %374 = vmatprep.subr.mxu0 0.0
    %375 = vmatpush2.msra.mxu0 0.0
    %376 = vmatprep.subr.mxu0 0.0
    %377 = vmatpush2.msra.mxu0 0.0
    %378 = vmatprep.subr.mxu0 0.0
    %379 = vmatpush2.msra.mxu0 0.0
    %380 = vmatprep.subr.mxu0 0.0
    %381 = vmatpush2.msra.mxu0 0.0
    %382 = vmatprep.subr.mxu0 0.0
    %383 = vmatpush2.msra.mxu0 0.0
    %384 = vmatprep.subr.mxu0 0.0
    %385 = vmatpush2.msra.mxu0 0.0
    %386 = vmatprep.subr.mxu0 0.0
    %387 = vmatpush2.msra.mxu0 0.0
    %388 = vmatprep.subr.mxu0 0.0
    %389 = vmatpush2.msra.mxu0 0.0
    %390 = vmatprep.subr.mxu0 0.0
    %391 = vmatpush2.msra.mxu0 0.0
    %392 = vmatprep.subr.mxu0 0.0
    %393 = vmatpush2.msra.mxu0 0.0
    %394 = vmatprep.subr.mxu0 0.0
    %395 = vmatpush2.msra.mxu0 0.0
    %396 = vmatprep.subr.mxu0 0.0
    %397 = vmatpush2.msra.mxu0 0.0
    %398 = vmatprep.subr.mxu0 0.0
    %399 = vmatpush2.msra.mxu0 0.0
    %400 = vmatprep.subr.mxu0 0.0
    %401 = vmatpush2.msra.mxu0 0.0
    %402 = vmatprep.mubr.f32.mxu0 0.0
    %403 = vmatmul.mubr.f32.gmra.mxu0 %v57
    %v404 = vpop.f32.mrf.mxu0
    %v405 = vadd.f32 0.0, %v404
    %v406 = vpop.f32.mrf.mxu0
    %407 = vmatprep.mubr.f32.mxu0 0.0
    %408 = vmatmul.mubr.f32.gmra.mxu0 %v60
    %v409 = vpop.f32.mrf.mxu0
    %v410 = vadd.f32 0.0, %v409
    %v411 = vpop.f32.mrf.mxu0
    %412 = vdwg.mxu0
    %vm413 = vcmp.eq.s32.totalorder %v32, 2
    %vm414 = vcmp.eq.s32.totalorder %v33, 2
    %v415 = vsel %vm413, 1, 0
    %v416 = vsel %vm414, 1, 0
    %417 = vset.pattern.permute.xlu0 0
    %418 = vperm.xlu0 %417, %v415
    %v419 = vpop.permute.xlu0 %418
    %420 = vset.pattern.permute.xlu0 0
    %421 = vperm.xlu0 %420, %v416
    %v422 = vpop.permute.xlu0 %421
    %vm423 = vcmp.eq.s32.totalorder %v419, 1
    %vm424 = vcmp.eq.s32.totalorder %v422, 1
    %v425 = vsel %vm423, %v405, 0.0
    %v426 = vsel %vm424, %v410, 0.0
    %v427 = vadd.f32 %v331, %v425
    %v428 = vadd.f32 %v332, %v426
    %s429 = scalar_lea.vmem [#allocation2], 96
    %v430 = vld [vmem:[%s429] sm:$0xff]
    %v431 = vld [vmem:[%s429 + $0x8] sm:$0xff]
    %v432 = vld [vmem:[%s429 + $0x10] sm:$0xff]
    %v433 = vld [vmem:[%s429 + $0x18] sm:$0xff]
    %434 = vmatprep.subr.mxu0 0.0
    %435 = vmatpush1.msra.mxu0 0.0
    %436 = vmatprep.subr.mxu0 0.0
    %437 = vmatpush1.msra.mxu0 0.0
    %438 = vmatprep.subr.mxu0 0.0
    %439 = vmatpush1.msra.mxu0 0.0
    %440 = vmatprep.subr.mxu0 0.0
    %441 = vmatpush1.msra.mxu0 0.0
    %442 = vmatprep.subr.mxu0 0.0
    %443 = vmatpush1.msra.mxu0 0.0
    %444 = vmatprep.subr.mxu0 0.0
    %445 = vmatpush1.msra.mxu0 0.0
    %446 = vmatprep.subr.mxu0 0.0
    %447 = vmatpush1.msra.mxu0 0.0
    %448 = vmatprep.subr.mxu0 0.0
    %449 = vmatpush1.msra.mxu0 0.0
    %450 = vmatprep.subr.mxu0 0.0
    %451 = vmatpush1.msra.mxu0 0.0
    %452 = vmatprep.subr.mxu0 0.0
    %453 = vmatpush1.msra.mxu0 0.0
    %454 = vmatprep.subr.mxu0 0.0
    %455 = vmatpush1.msra.mxu0 0.0
    %456 = vmatprep.subr.mxu0 0.0
    %457 = vmatpush1.msra.mxu0 0.0
    %458 = vmatprep.subr.mxu0 0.0
    %459 = vmatpush1.msra.mxu0 %v433
    %460 = vmatprep.subr.mxu0 0.0
    %461 = vmatpush1.msra.mxu0 %v432
    %462 = vmatprep.subr.mxu0 0.0
    %463 = vmatpush1.msra.mxu0 %v431
    %464 = vmatprep.subr.mxu0 0.0
    %465 = vmatpush1.msra.mxu0 %v430
    %466 = vmatprep.subr.mxu0 0.0
    %467 = vmatpush2.msra.mxu0 0.0
    %468 = vmatprep.subr.mxu0 0.0
    %469 = vmatpush2.msra.mxu0 0.0
    %470 = vmatprep.subr.mxu0 0.0
    %471 = vmatpush2.msra.mxu0 0.0
    %472 = vmatprep.subr.mxu0 0.0
    %473 = vmatpush2.msra.mxu0 0.0
    %474 = vmatprep.subr.mxu0 0.0
    %475 = vmatpush2.msra.mxu0 0.0
    %476 = vmatprep.subr.mxu0 0.0
    %477 = vmatpush2.msra.mxu0 0.0
    %478 = vmatprep.subr.mxu0 0.0
    %479 = vmatpush2.msra.mxu0 0.0
    %480 = vmatprep.subr.mxu0 0.0
    %481 = vmatpush2.msra.mxu0 0.0
    %482 = vmatprep.subr.mxu0 0.0
    %483 = vmatpush2.msra.mxu0 0.0
    %484 = vmatprep.subr.mxu0 0.0
    %485 = vmatpush2.msra.mxu0 0.0
    %486 = vmatprep.subr.mxu0 0.0
    %487 = vmatpush2.msra.mxu0 0.0
    %488 = vmatprep.subr.mxu0 0.0
    %489 = vmatpush2.msra.mxu0 0.0
    %490 = vmatprep.subr.mxu0 0.0
    %491 = vmatpush2.msra.mxu0 0.0
    %492 = vmatprep.subr.mxu0 0.0
    %493 = vmatpush2.msra.mxu0 0.0
    %494 = vmatprep.subr.mxu0 0.0
    %495 = vmatpush2.msra.mxu0 0.0
    %496 = vmatprep.subr.mxu0 0.0
    %497 = vmatpush2.msra.mxu0 0.0
    %498 = vmatprep.mubr.f32.mxu0 0.0
    %499 = vmatmul.mubr.f32.gmra.mxu0 %v57
    %v500 = vpop.f32.mrf.mxu0
    %v501 = vadd.f32 0.0, %v500
    %v502 = vpop.f32.mrf.mxu0
    %503 = vmatprep.mubr.f32.mxu0 0.0
    %504 = vmatmul.mubr.f32.gmra.mxu0 %v60
    %v505 = vpop.f32.mrf.mxu0
    %v506 = vadd.f32 0.0, %v505
    %v507 = vpop.f32.mrf.mxu0
    %508 = vdwg.mxu0
    %vm509 = vcmp.eq.s32.totalorder %v32, 3
    %vm510 = vcmp.eq.s32.totalorder %v33, 3
    %v511 = vsel %vm509, 1, 0
    %v512 = vsel %vm510, 1, 0
    %513 = vset.pattern.permute.xlu0 0
    %514 = vperm.xlu0 %513, %v511
    %v515 = vpop.permute.xlu0 %514
    %516 = vset.pattern.permute.xlu0 0
    %517 = vperm.xlu0 %516, %v512
    %v518 = vpop.permute.xlu0 %517
    %vm519 = vcmp.eq.s32.totalorder %v515, 1
    %vm520 = vcmp.eq.s32.totalorder %v518, 1
    %v521 = vsel %vm519, %v501, 0.0
    %v522 = vsel %vm520, %v506, 0.0
    %v523 = vadd.f32 %v427, %v521
    %v524 = vadd.f32 %v428, %v522
    %525 = vst.msk [vmem:[#allocation5] sm:$0xff] %vm55, %v523
    %526 = vst.msk [vmem:[#allocation5 + $0x8] sm:$0xff] %vm55, %v524
    // Predicated region
    $region22: #{tpu_custom_call.1} parent=1 // pred_check
      _
    $region23: #{tpu_custom_call.1} parent=1 // pred_check_branch
      %528 = sbr.rel (0) target = $region25
    $region24: #{tpu_custom_call.1} parent=1 // pred_region
      %s530 = ssub.s32 256, 256
      %531 = vsyncadd [#allocation4], %s530
      %s532 = sshll.u32 [#allocation5], 4
      %s533 = int_to_ptr.vmem [resolvable:$true] %s532
      %538 = dma.vmem_to_hbm [thread:$0]  %s533, 256, %s4, [#allocation4], 128, 128, 8
    $region25: #{tpu_custom_call.1} parent=1 // pred_fallthru
      _
    // Predicated region
    $region26: #{tpu_custom_call.1} parent=1 // pred_check
      _
    $region27: #{tpu_custom_call.1} parent=1 // pred_check_branch
      %540 = sbr.rel (0) target = $region29
    $region28: #{tpu_custom_call.1} parent=1 // pred_region
      %541 = dma.done [#allocation4], 256
    $region29: #{tpu_custom_call.1} parent=1 // pred_fallthru
      _
    %542 = vsyncpa [#allocation3], 1
    %543 = vsyncpa [#allocation4], 1

</llo_original>
